<compile_context>
chip_gen: v7x
topology: tpu7x:2x2x1
jax: 0.10.0
libtpu: 0.0.40
codegen_flags: <defaults>
</compile_context>

<pallas_src>
import jax
import jax.numpy as jnp
from jax.experimental import pallas as pl
from jax.experimental.pallas import tpu as pltpu


def diayn_kernel(obs_ref, w1_ref, b1_ref, w2_ref, b2_ref, w3_ref, b3_ref,
                 out_ref):
    # Cast the streamed obs tile to the compute dtype *after* the load so obs
    # HBM traffic stays at the source dtype (no wrapper-side cast round trip).
    x = obs_ref[...].astype(w1_ref.dtype)

    # Layer 1: Linear + ReLU (f32 accumulation on the MXU).
    h1 = jnp.dot(x, w1_ref[...], preferred_element_type=jnp.float32)
    h1 = jnp.maximum(h1 + b1_ref[...], 0.0)          # bias [1, H] broadcasts

    # Layer 2: Linear + ReLU.
    h2 = jnp.dot(h1.astype(w2_ref.dtype), w2_ref[...],
                 preferred_element_type=jnp.float32)
    h2 = jnp.maximum(h2 + b2_ref[...], 0.0)

    # Layer 3: skill head.  Columns are zero-padded to a multiple of 128 in
    # the wrapper, so this store is a full-128-lane unmasked vst.
    y = jnp.dot(h2.astype(w3_ref.dtype), w3_ref[...],
                preferred_element_type=jnp.float32)
    out_ref[...] = (y + b3_ref[...]).astype(out_ref.dtype)


def _round_up(x, m):
    return ((x + m - 1) // m) * m


def prepare_params(params, compute_dtype=jnp.bfloat16):
    """One-time parameter packing (call OUTSIDE the hot path).

    Casts weights to the compute dtype, keeps biases f32, and zero-pads the
    head (w3/b3) columns to the next multiple of 128 for lane-dense stores.
    """
    skill_dim = params["w3"].shape[1]
    out_cols = _round_up(skill_dim, 128)
    pad = out_cols - skill_dim
    w3 = jnp.pad(params["w3"], ((0, 0), (0, pad)))
    b3 = jnp.pad(params["b3"], ((0, 0), (0, pad)))
    return {
        "w1": params["w1"].astype(compute_dtype),
        "b1": params["b1"].astype(jnp.float32),
        "w2": params["w2"].astype(compute_dtype),
        "b2": params["b2"].astype(jnp.float32),
        "w3": w3.astype(compute_dtype),
        "b3": b3.astype(jnp.float32),
        "skill_dim": skill_dim,
    }


def diayn_forward(obs, prepared, *, block_b=1024, out_dtype=jnp.float32):
    """obs: [B, obs_dim] (source dtype, e.g. f32); prepared: prepare_params()."""
    B, obs_dim = obs.shape
    w1, b1 = prepared["w1"], prepared["b1"]
    w2, b2 = prepared["w2"], prepared["b2"]
    w3, b3 = prepared["w3"], prepared["b3"]
    skill_dim = prepared["skill_dim"]
    hidden_dim = w1.shape[1]
    out_cols = w3.shape[1]
    compute_dtype = w1.dtype

    # Batch tile: native sublane alignment (16 rows bf16 / 8 rows f32), large
    # enough to amortize the ~0.35us per-grid-step overhead, but clamped so
    # the grid has >= 2 steps whenever the batch allows it (v7x megacore).
    align = 16 if compute_dtype == jnp.bfloat16 else 8
    tb = min(block_b, B)
    if B > align:                       # enough rows for at least two tiles
        tb = min(tb, -(-B // 2))        # ceil(B / 2)
    TB = _round_up(max(tb, 1), align)
    B_pad = _round_up(B, TB)
    grid = (B_pad // TB,)

    # Only pad the ragged trailing tile (no dtype cast here).
    obs_p = obs if B_pad == B else jnp.pad(obs, ((0, B_pad - B), (0, 0)))

    def resident(arr):                  # pinned in VMEM across all grid steps
        return pl.BlockSpec(arr.shape, lambda i: (0, 0))

    # Logical MLP cost (not the padded-head flops), for XLA scheduling.
    flops = 2 * B * (obs_dim * hidden_dim + hidden_dim * hidden_dim
                     + hidden_dim * skill_dim)
    weight_bytes = sum(int(a.size) * a.dtype.itemsize
                       for a in (w1, b1, w2, b2, w3, b3))
    bytes_accessed = (int(obs_p.size) * obs_p.dtype.itemsize + weight_bytes
                      + B_pad * out_cols * jnp.dtype(out_dtype).itemsize)

    # Explicit VMEM budget: double-buffered weights + double-buffered obs/out
    # tiles + f32 intermediates, with headroom; clamped to <= 64 MiB so it is
    # valid from v5e (16 MiB default scoped) through v7x (64 MiB per TC).
    tile_bytes = (TB * obs_dim * obs_p.dtype.itemsize
                  + TB * out_cols * jnp.dtype(out_dtype).itemsize)
    inter_bytes = 2 * TB * hidden_dim * 4 + TB * out_cols * 4
    vmem_needed = 2 * weight_bytes + 2 * tile_bytes + inter_bytes
    vmem_limit = int(min(max(int(vmem_needed * 1.5) + (4 << 20), 16 << 20),
                         64 << 20))

    out_p = pl.pallas_call(
        diayn_kernel,
        out_shape=jax.ShapeDtypeStruct((B_pad, out_cols), out_dtype),
        grid=grid,
        in_specs=[
            pl.BlockSpec((TB, obs_dim), lambda i: (i, 0)),   # streamed obs
            resident(w1), resident(b1),
            resident(w2), resident(b2),
            resident(w3), resident(b3),
        ],
        out_specs=pl.BlockSpec((TB, out_cols), lambda i: (i, 0)),
        compiler_params=pltpu.CompilerParams(
            dimension_semantics=("parallel",),
            vmem_limit_bytes=vmem_limit),
        cost_estimate=pl.CostEstimate(
            flops=int(flops), transcendentals=0,
            bytes_accessed=int(bytes_accessed)),
    )(obs_p, w1, b1, w2, b2, w3, b3)

    # Drop batch padding and the zero-padded head columns (cheap slices).
    return out_p[:B, :skill_dim]


def diayn_reference(obs, params, compute_dtype=jnp.float32):
    """Pure-JAX reference mirroring the kernel's dtype handling."""
    cd = compute_dtype
    x = obs.astype(cd)
    w1, w2, w3 = (params[k].astype(cd) for k in ("w1", "w2", "w3"))
    b1, b2, b3 = (params[k].astype(jnp.float32) for k in ("b1", "b2", "b3"))
    h1 = jnp.maximum(jnp.dot(x, w1, preferred_element_type=jnp.float32) + b1, 0.0)
    h2 = jnp.maximum(jnp.dot(h1.astype(cd), w2,
                             preferred_element_type=jnp.float32) + b2, 0.0)
    return jnp.dot(h2.astype(cd), w3, preferred_element_type=jnp.float32) + b3


def init_params(key, obs_dim, skill_dim, hidden_dim):
    """Deterministic test init (scaled normals; utils.weight_init is orthogonal
    + zero bias, which only changes values, not the forward computation)."""
    k1, k2, k3 = jax.random.split(key, 3)

    def scaled(k, fan_in, fan_out):
        return (jax.random.normal(k, (fan_in, fan_out), jnp.float32)
                / jnp.sqrt(jnp.float32(fan_in)))

    return {
        "w1": scaled(k1, obs_dim, hidden_dim),
        "b1": jnp.zeros((1, hidden_dim), jnp.float32),
        "w2": scaled(k2, hidden_dim, hidden_dim),
        "b2": jnp.zeros((1, hidden_dim), jnp.float32),
        "w3": scaled(k3, hidden_dim, skill_dim),
        "b3": jnp.zeros((1, skill_dim), jnp.float32),
    }


if __name__ == "__main__":
    # Small shapes consistent with the module's forward: obs is [B, obs_dim].
    B, obs_dim, skill_dim, hidden_dim = 8, 24, 16, 32

    key = jax.random.PRNGKey(0)
    k_obs, k_params, k_obs2 = jax.random.split(key, 3)

    obs = jax.random.normal(k_obs, (B, obs_dim), jnp.float32)
    params = init_params(k_params, obs_dim, skill_dim, hidden_dim)

    # f32 compute path (single grid step).
    prep_f32 = prepare_params(params, compute_dtype=jnp.float32)
    out_f32 = jax.block_until_ready(diayn_forward(obs, prep_f32))
    ref_f32 = diayn_reference(obs, params, jnp.float32)
    assert out_f32.shape == (B, skill_dim)
    assert jnp.allclose(out_f32, ref_f32, atol=5e-4, rtol=5e-4)

    # bf16-weight / bf16-compute path (halves weight HBM traffic, f32 accum).
    prep_bf16 = prepare_params(params, compute_dtype=jnp.bfloat16)
    out_bf16 = jax.block_until_ready(diayn_forward(obs, prep_bf16))
    ref_bf16 = diayn_reference(obs, params, jnp.bfloat16)
    assert out_bf16.shape == (B, skill_dim)
    assert jnp.allclose(out_bf16, ref_bf16, atol=5e-2, rtol=5e-2)

    # Multi-tile grid path (ragged batch padding + pipelined tiles, grid > 1).
    B2 = 200
    obs2 = jax.random.normal(k_obs2, (B2, obs_dim), jnp.float32)
    out2 = jax.block_until_ready(diayn_forward(obs2, prep_f32, block_b=64))
    ref2 = diayn_reference(obs2, params, jnp.float32)
    assert out2.shape == (B2, skill_dim)
    assert jnp.allclose(out2, ref2, atol=5e-4, rtol=5e-4)

    print("KERNEL_OK")
</pallas_src>

<mosaic_0001>
module attributes {stable_mosaic.version = 11 : i64} {
  func.func @diayn_kernel(%arg0: i32, %arg1: memref<8x24xf32, #tpu.memory_space<vmem>>, %arg2: memref<24x32xf32, #tpu.memory_space<vmem>>, %arg3: memref<1x32xf32, #tpu.memory_space<vmem>>, %arg4: memref<32x32xf32, #tpu.memory_space<vmem>>, %arg5: memref<1x32xf32, #tpu.memory_space<vmem>>, %arg6: memref<32x128xf32, #tpu.memory_space<vmem>>, %arg7: memref<1x128xf32, #tpu.memory_space<vmem>>, %arg8: memref<8x128xf32, #tpu.memory_space<vmem>>) attributes {dimension_semantics = [#tpu.dimension_semantics<parallel>], iteration_bounds = array<i64: 1>, scalar_prefetch = 0 : i64, scratch_operands = 0 : i64, tpu.core_type = #tpu.core_type<tc>, window_params = [{transform_indices = @transform_0, window_bounds = array<i64: 8, 24>}, {pipeline_mode = #tpu.pipeline_mode<synchronous>, transform_indices = @transform_1, window_bounds = array<i64: 24, 32>}, {pipeline_mode = #tpu.pipeline_mode<synchronous>, transform_indices = @transform_2, window_bounds = array<i64: 1, 32>}, {pipeline_mode = #tpu.pipeline_mode<synchronous>, transform_indices = @transform_3, window_bounds = array<i64: 32, 32>}, {pipeline_mode = #tpu.pipeline_mode<synchronous>, transform_indices = @transform_4, window_bounds = array<i64: 1, 32>}, {pipeline_mode = #tpu.pipeline_mode<synchronous>, transform_indices = @transform_5, window_bounds = array<i64: 32, 128>}, {pipeline_mode = #tpu.pipeline_mode<synchronous>, transform_indices = @transform_6, window_bounds = array<i64: 1, 128>}, {transform_indices = @transform_7, window_bounds = array<i64: 8, 128>}]} {
    %c0 = arith.constant 0 : index
    %c0_0 = arith.constant 0 : index
    %0 = vector.load %arg1[%c0, %c0_0] : memref<8x24xf32, #tpu.memory_space<vmem>>, vector<8x24xf32>
    %c0_1 = arith.constant 0 : index
    %c0_2 = arith.constant 0 : index
    %1 = vector.load %arg2[%c0_1, %c0_2] : memref<24x32xf32, #tpu.memory_space<vmem>>, vector<24x32xf32>
    %cst = arith.constant dense<0.000000e+00> : vector<8x32xf32>
    %2 = tpu.matmul %0, %1, %cst {dimension_numbers = #tpu.dot_dimension_numbers<[1], [0], [0], [1], [0, 0, 1, 1], [], []>} : vector<8x24xf32>, vector<24x32xf32>, vector<8x32xf32> -> vector<8x32xf32>
    %c0_3 = arith.constant 0 : index
    %c0_4 = arith.constant 0 : index
    %3 = vector.load %arg3[%c0_3, %c0_4] : memref<1x32xf32, #tpu.memory_space<vmem>>, vector<1x32xf32>
    %4 = vector.broadcast %3 : vector<1x32xf32> to vector<8x32xf32>
    %5 = arith.addf %2, %4 : vector<8x32xf32>
    %cst_5 = arith.constant 0.000000e+00 : f32
    %6 = vector.broadcast %cst_5 : f32 to vector<8x32xf32>
    %7 = arith.maximumf %5, %6 : vector<8x32xf32>
    %c0_6 = arith.constant 0 : index
    %c0_7 = arith.constant 0 : index
    %8 = vector.load %arg4[%c0_6, %c0_7] : memref<32x32xf32, #tpu.memory_space<vmem>>, vector<32x32xf32>
    %cst_8 = arith.constant dense<0.000000e+00> : vector<8x32xf32>
    %9 = tpu.matmul %7, %8, %cst_8 {dimension_numbers = #tpu.dot_dimension_numbers<[1], [0], [0], [1], [0, 0, 1, 1], [], []>} : vector<8x32xf32>, vector<32x32xf32>, vector<8x32xf32> -> vector<8x32xf32>
    %c0_9 = arith.constant 0 : index
    %c0_10 = arith.constant 0 : index
    %10 = vector.load %arg5[%c0_9, %c0_10] : memref<1x32xf32, #tpu.memory_space<vmem>>, vector<1x32xf32>
    %11 = vector.broadcast %10 : vector<1x32xf32> to vector<8x32xf32>
    %12 = arith.addf %9, %11 : vector<8x32xf32>
    %cst_11 = arith.constant 0.000000e+00 : f32
    %13 = vector.broadcast %cst_11 : f32 to vector<8x32xf32>
    %14 = arith.maximumf %12, %13 : vector<8x32xf32>
    %c0_12 = arith.constant 0 : index
    %c0_13 = arith.constant 0 : index
    %15 = vector.load %arg6[%c0_12, %c0_13] : memref<32x128xf32, #tpu.memory_space<vmem>>, vector<32x128xf32>
    %cst_14 = arith.constant dense<0.000000e+00> : vector<8x128xf32>
    %16 = tpu.matmul %14, %15, %cst_14 {dimension_numbers = #tpu.dot_dimension_numbers<[1], [0], [0], [1], [0, 0, 1, 1], [], []>} : vector<8x32xf32>, vector<32x128xf32>, vector<8x128xf32> -> vector<8x128xf32>
    %c0_15 = arith.constant 0 : index
    %c0_16 = arith.constant 0 : index
    %17 = vector.load %arg7[%c0_15, %c0_16] : memref<1x128xf32, #tpu.memory_space<vmem>>, vector<1x128xf32>
    %18 = vector.broadcast %17 : vector<1x128xf32> to vector<8x128xf32>
    %19 = arith.addf %16, %18 : vector<8x128xf32>
    %c0_17 = arith.constant 0 : index
    %c0_18 = arith.constant 0 : index
    %20 = vector.load %arg8[%c0_17, %c0_18] : memref<8x128xf32, #tpu.memory_space<vmem>>, vector<8x128xf32>
    tpu.vector_store %arg8[%c0_17, %c0_18], %19 {strides = array<i32>} : memref<8x128xf32, #tpu.memory_space<vmem>>, vector<8x128xf32>,
    return
  }
  func.func @transform_0(%arg0: i32) -> (i32, i32) {
    %c0_i32 = arith.constant 0 : i32
    %c0_i32_0 = arith.constant 0 : i32
    return %arg0, %c0_i32 : i32, i32
  }
  func.func @transform_1(%arg0: i32) -> (i32, i32) {
    %c0_i32 = arith.constant 0 : i32
    %c0_i32_0 = arith.constant 0 : i32
    %c0_i32_1 = arith.constant 0 : i32
    return %c0_i32, %c0_i32_0 : i32, i32
  }
  func.func @transform_2(%arg0: i32) -> (i32, i32) {
    %c0_i32 = arith.constant 0 : i32
    %c0_i32_0 = arith.constant 0 : i32
    %c0_i32_1 = arith.constant 0 : i32
    return %c0_i32, %c0_i32_0 : i32, i32
  }
  func.func @transform_3(%arg0: i32) -> (i32, i32) {
    %c0_i32 = arith.constant 0 : i32
    %c0_i32_0 = arith.constant 0 : i32
    %c0_i32_1 = arith.constant 0 : i32
    return %c0_i32, %c0_i32_0 : i32, i32
  }
  func.func @transform_4(%arg0: i32) -> (i32, i32) {
    %c0_i32 = arith.constant 0 : i32
    %c0_i32_0 = arith.constant 0 : i32
    %c0_i32_1 = arith.constant 0 : i32
    return %c0_i32, %c0_i32_0 : i32, i32
  }
  func.func @transform_5(%arg0: i32) -> (i32, i32) {
    %c0_i32 = arith.constant 0 : i32
    %c0_i32_0 = arith.constant 0 : i32
    %c0_i32_1 = arith.constant 0 : i32
    return %c0_i32, %c0_i32_0 : i32, i32
  }
  func.func @transform_6(%arg0: i32) -> (i32, i32) {
    %c0_i32 = arith.constant 0 : i32
    %c0_i32_0 = arith.constant 0 : i32
    %c0_i32_1 = arith.constant 0 : i32
    return %c0_i32, %c0_i32_0 : i32, i32
  }
  func.func @transform_7(%arg0: i32) -> (i32, i32) {
    %c0_i32 = arith.constant 0 : i32
    %c0_i32_0 = arith.constant 0 : i32
    return %arg0, %c0_i32 : i32, i32
  }
}

</mosaic_0001>

<llo_original>
// kernel: tpu_custom_call.1
$region0: #{tpu_custom_call.1}
  #allocation0 [shape = 'u32[]', space=smem, size = 0x4, offset = 0x4, fixed_abs, tag = 'smem constant byte address 0x4 - core index']
  #allocation1 [shape = 'u32[144,128]{1,0:T(1,128)}', space=vmem, size = 0x12000, scoped, tag = 'internal scratch']
  %s0 = inlined_call_operand.hbm [shape: f32[8,24], index: 0, kind: input, shape index: {}]
  %s1 = inlined_call_operand.hbm [shape: f32[24,32], index: 1, kind: input, shape index: {}]
  %s2 = inlined_call_operand.vmem [shape: f32[1,32], index: 2, kind: input, shape index: {}]
  %s3 = inlined_call_operand.hbm [shape: f32[32,32], index: 3, kind: input, shape index: {}]
  %s4 = inlined_call_operand.vmem [shape: f32[1,32], index: 4, kind: input, shape index: {}]
  %s5 = inlined_call_operand.hbm [shape: f32[32,128], index: 5, kind: input, shape index: {}]
  %s6 = inlined_call_operand.vmem [shape: f32[1,128], index: 6, kind: input, shape index: {}]
  %s7 = inlined_call_operand.hbm [shape: f32[8,128], index: 7, kind: output, shape index: {}]
  %s8 = sld [smem:[#allocation0]]
  $region54: #{tpu_custom_call.1} parent=0
    _
  %s10 = ssub.s32 1, %s8
  %s11 = scalar_select 0, %s10, %s8
  $region1: #{tpu_custom_call.1} parent=0
    #allocation2 [shape = 'u8[4096]{0}', space=vmem, size = 0x1000, scoped, tag = 'input window, operand 0, single buffered']
    #allocation3 [shape = 's32[1]{0}', space=sflag, size = 0x4, scoped, tag = 'scoped memory for tpu_custom_call.1']
    #allocation4 [shape = 's32[1]{0}', space=sflag, size = 0x4, scoped, tag = 'scoped memory for tpu_custom_call.1']
    #allocation5 [shape = 'u8[12288]{0}', space=vmem, size = 0x3000, scoped, tag = 'input window, operand 1, single buffered']
    #allocation6 [shape = 's32[1]{0}', space=sflag, size = 0x4, scoped, tag = 'scoped memory for tpu_custom_call.1']
    #allocation7 [shape = 'u8[16384]{0}', space=vmem, size = 0x4000, scoped, tag = 'input window, operand 3, single buffered']
    #allocation8 [shape = 'u8[16384]{0}', space=vmem, size = 0x4000, scoped, tag = 'input window, operand 5, single buffered']
    #allocation9 [shape = 's32[1]{0}', space=sflag, size = 0x4, scoped, tag = 'scoped memory for tpu_custom_call.1']
    #allocation10 [shape = 'u8[4096]{0}', space=vmem, size = 0x1000, scoped, tag = 'output window, operand 0, single buffered']
    %12 = vsyncpa [#allocation3], 0
    %13 = vsyncpa [#allocation6], 0
    %14 = vsyncpa [#allocation9], 0
    %15 = vsyncpa [#allocation4], 0
    // Predicated region
    $region2: #{tpu_custom_call.1} parent=1 // pred_check
      _
    $region3: #{tpu_custom_call.1} parent=1 // pred_check_branch
      %17 = sbr.rel (0) target = $region5
    $region4: #{tpu_custom_call.1} parent=1 // pred_region
      %s19 = ssub.s32 128, 128
      %20 = vsyncadd [#allocation3], %s19
      %s22 = sshll.u32 [#allocation2], 4
      %s23 = int_to_ptr.vmem [resolvable:$true] %s22
      %25 = dma.hbm_to_vmem [thread:$0]  %s0, 128, %s23, [#allocation3]
    $region5: #{tpu_custom_call.1} parent=1 // pred_fallthru
      _
    // Predicated region
    $region6: #{tpu_custom_call.1} parent=1 // pred_check
      _
    $region7: #{tpu_custom_call.1} parent=1 // pred_check_branch
      %27 = sbr.rel (0) target = $region9
    $region8: #{tpu_custom_call.1} parent=1 // pred_region
      %s29 = ssub.s32 384, 384
      %30 = vsyncadd [#allocation6], %s29
      %s31 = sshll.u32 [#allocation5], 4
      %s32 = int_to_ptr.vmem [resolvable:$true] %s31
      %37 = dma.hbm_to_vmem [thread:$0]  %s1, 384, %s32, [#allocation6], 128, 128, 8
    $region9: #{tpu_custom_call.1} parent=1 // pred_fallthru
      _
    // Predicated region
    $region10: #{tpu_custom_call.1} parent=1 // pred_check
      _
    $region11: #{tpu_custom_call.1} parent=1 // pred_check_branch
      %39 = sbr.rel (0) target = $region13
    $region12: #{tpu_custom_call.1} parent=1 // pred_region
      _
    $region13: #{tpu_custom_call.1} parent=1 // pred_fallthru
      _
    // Predicated region
    $region14: #{tpu_custom_call.1} parent=1 // pred_check
      _
    $region15: #{tpu_custom_call.1} parent=1 // pred_check_branch
      %41 = sbr.rel (0) target = $region17
    $region16: #{tpu_custom_call.1} parent=1 // pred_region
      %s43 = ssub.s32 512, 512
      %44 = vsyncadd [#allocation6], %s43
      %s45 = sshll.u32 [#allocation7], 4
      %s46 = int_to_ptr.vmem [resolvable:$true] %s45
      %51 = dma.hbm_to_vmem [thread:$0]  %s3, 512, %s46, [#allocation6], 128, 128, 8
    $region17: #{tpu_custom_call.1} parent=1 // pred_fallthru
      _
    // Predicated region
    $region18: #{tpu_custom_call.1} parent=1 // pred_check
      _
    $region19: #{tpu_custom_call.1} parent=1 // pred_check_branch
      %53 = sbr.rel (0) target = $region21
    $region20: #{tpu_custom_call.1} parent=1 // pred_region
      _
    $region21: #{tpu_custom_call.1} parent=1 // pred_fallthru
      _
    // Predicated region
    $region22: #{tpu_custom_call.1} parent=1 // pred_check
      _
    $region23: #{tpu_custom_call.1} parent=1 // pred_check_branch
      %55 = sbr.rel (0) target = $region25
    $region24: #{tpu_custom_call.1} parent=1 // pred_region
      %s57 = ssub.s32 512, 512
      %58 = vsyncadd [#allocation9], %s57
      %s59 = sshll.u32 [#allocation8], 4
      %s60 = int_to_ptr.vmem [resolvable:$true] %s59
      %65 = dma.hbm_to_vmem [thread:$0]  %s5, 512, %s60, [#allocation9], 128, 128, 8
    $region25: #{tpu_custom_call.1} parent=1 // pred_fallthru
      _
    // Predicated region
    $region26: #{tpu_custom_call.1} parent=1 // pred_check
      _
    $region27: #{tpu_custom_call.1} parent=1 // pred_check_branch
      %67 = sbr.rel (0) target = $region29
    $region28: #{tpu_custom_call.1} parent=1 // pred_region
      _
    $region29: #{tpu_custom_call.1} parent=1 // pred_fallthru
      _
    // Predicated region
    $region30: #{tpu_custom_call.1} parent=1 // pred_check
      _
    $region31: #{tpu_custom_call.1} parent=1 // pred_check_branch
      %69 = sbr.rel (0) target = $region33
    $region32: #{tpu_custom_call.1} parent=1 // pred_region
      %70 = dma.done [#allocation3], 128
    $region33: #{tpu_custom_call.1} parent=1 // pred_fallthru
      _
    // Predicated region
    $region34: #{tpu_custom_call.1} parent=1 // pred_check
      _
    $region35: #{tpu_custom_call.1} parent=1 // pred_check_branch
      %72 = sbr.rel (0) target = $region37
    $region36: #{tpu_custom_call.1} parent=1 // pred_region
      %73 = dma.done [#allocation6], 384
    $region37: #{tpu_custom_call.1} parent=1 // pred_fallthru
      _
    // Predicated region
    $region38: #{tpu_custom_call.1} parent=1 // pred_check
      _
    $region39: #{tpu_custom_call.1} parent=1 // pred_check_branch
      %75 = sbr.rel (0) target = $region41
    $region40: #{tpu_custom_call.1} parent=1 // pred_region
      %76 = dma.done [#allocation6], 512
    $region41: #{tpu_custom_call.1} parent=1 // pred_fallthru
      _
    // Predicated region
    $region42: #{tpu_custom_call.1} parent=1 // pred_check
      _
    $region43: #{tpu_custom_call.1} parent=1 // pred_check_branch
      %78 = sbr.rel (0) target = $region45
    $region44: #{tpu_custom_call.1} parent=1 // pred_region
      %79 = dma.done [#allocation9], 512
    $region45: #{tpu_custom_call.1} parent=1 // pred_fallthru
      _
    %v80 = vld [vmem:[#allocation2] sm:$0xff]
    %v81 = vld [vmem:[#allocation5] sm:$0xff]
    %v82 = vld [vmem:[#allocation5 + $0x8] sm:$0xff]
    %v83 = vld [vmem:[#allocation5 + $0x10] sm:$0xff]
    %v84 = vld [vmem:[%s2] sm:$0x1]
    %v86 = vlaneseq
    %v87 = vshrl.u32 %v86, 7
    %v88 = vsub.s32 0, %v87
    %v89 = vrot.slane %v84, %v88
    %vm91 = vcmask 195584
    %v93 = vsel %vm91, %v80, 0
    %95 = vmatprep.subr.mxu0 0.0
    %96 = vmatpush1.msra.mxu0 %v81
    %97 = vmatprep.subr.mxu0 0.0
    %98 = vmatpush1.msra.mxu0 %v82
    %99 = vmatprep.subr.mxu0 0.0
    %100 = vmatpush1.msra.mxu0 %v83
    %101 = vmatprep.subr.mxu0 0.0
    %102 = vmatpush1.msra.mxu0 0.0
    %103 = vmatprep.subr.mxu0 0.0
    %104 = vmatpush1.msra.mxu0 0.0
    %105 = vmatprep.subr.mxu0 0.0
    %106 = vmatpush1.msra.mxu0 0.0
    %107 = vmatprep.subr.mxu0 0.0
    %108 = vmatpush1.msra.mxu0 0.0
    %109 = vmatprep.subr.mxu0 0.0
    %110 = vmatpush1.msra.mxu0 0.0
    %111 = vmatprep.subr.mxu0 0.0
    %112 = vmatpush1.msra.mxu0 0.0
    %113 = vmatprep.subr.mxu0 0.0
    %114 = vmatpush1.msra.mxu0 0.0
    %115 = vmatprep.subr.mxu0 0.0
    %116 = vmatpush1.msra.mxu0 0.0
    %117 = vmatprep.subr.mxu0 0.0
    %118 = vmatpush1.msra.mxu0 0.0
    %119 = vmatprep.subr.mxu0 0.0
    %120 = vmatpush1.msra.mxu0 0.0
    %121 = vmatprep.subr.mxu0 0.0
    %122 = vmatpush1.msra.mxu0 0.0
    %123 = vmatprep.subr.mxu0 0.0
    %124 = vmatpush1.msra.mxu0 0.0
    %125 = vmatprep.subr.mxu0 0.0
    %126 = vmatpush1.msra.mxu0 0.0
    %127 = vmatprep.subr.mxu0 0.0
    %128 = vmatpush1.msra.mxu0 0.0
    %129 = vmatprep.subr.mxu0 0.0
    %130 = vmatpush1.msra.mxu0 0.0
    %131 = vmatprep.subr.mxu0 0.0
    %132 = vmatpush1.msra.mxu0 0.0
    %133 = vmatprep.subr.mxu0 0.0
    %134 = vmatpush1.msra.mxu0 0.0
    %135 = vmatprep.subr.mxu0 0.0
    %136 = vmatpush1.msra.mxu0 0.0
    %137 = vmatprep.subr.mxu0 0.0
    %138 = vmatpush1.msra.mxu0 0.0
    %139 = vmatprep.subr.mxu0 0.0
    %140 = vmatpush1.msra.mxu0 0.0
    %141 = vmatprep.subr.mxu0 0.0
    %142 = vmatpush1.msra.mxu0 0.0
    %143 = vmatprep.subr.mxu0 0.0
    %144 = vmatpush1.msra.mxu0 0.0
    %145 = vmatprep.subr.mxu0 0.0
    %146 = vmatpush1.msra.mxu0 0.0
    %147 = vmatprep.subr.mxu0 0.0
    %148 = vmatpush1.msra.mxu0 0.0
    %149 = vmatprep.subr.mxu0 0.0
    %150 = vmatpush1.msra.mxu0 0.0
    %151 = vmatprep.subr.mxu0 0.0
    %152 = vmatpush1.msra.mxu0 0.0
    %153 = vmatprep.subr.mxu0 0.0
    %154 = vmatpush1.msra.mxu0 0.0
    %155 = vmatprep.subr.mxu0 0.0
    %156 = vmatpush1.msra.mxu0 0.0
    %157 = vmatprep.subr.mxu0 0.0
    %158 = vmatpush1.msra.mxu0 0.0
    %159 = vmatprep.mubr.f32.mxu0 0.0
    %160 = vmatmul.mubr.f32.gmra.mrb[0].mxu0 %v93
    %v161 = vpop.f32.mrb[0].mxu0
    %v162 = vadd.f32 %v89, %v161
    %v163 = vpop.f32.mrb[0].mxu0
    %164 = vdwg.mxu0
    %v165 = vmax.f32 %v162, 0.0
    %v166 = vld [vmem:[#allocation7] sm:$0xff]
    %v167 = vld [vmem:[#allocation7 + $0x8] sm:$0xff]
    %v168 = vld [vmem:[#allocation7 + $0x10] sm:$0xff]
    %v169 = vld [vmem:[#allocation7 + $0x18] sm:$0xff]
    %v170 = vld [vmem:[%s4] sm:$0x1]
    %v172 = vlaneseq
    %v173 = vshrl.u32 %v172, 7
    %v174 = vsub.s32 0, %v173
    %v175 = vrot.slane %v170, %v174
    %vm177 = vcmask 261120
    %v179 = vsel %vm177, %v165, 0
    %181 = vmatprep.subr.mxu0 0.0
    %182 = vmatpush1.msra.mxu0 %v166
    %183 = vmatprep.subr.mxu0 0.0
    %184 = vmatpush1.msra.mxu0 %v167
    %185 = vmatprep.subr.mxu0 0.0
    %186 = vmatpush1.msra.mxu0 %v168
    %187 = vmatprep.subr.mxu0 0.0
    %188 = vmatpush1.msra.mxu0 %v169
    %189 = vmatprep.subr.mxu0 0.0
    %190 = vmatpush1.msra.mxu0 0.0
    %191 = vmatprep.subr.mxu0 0.0
    %192 = vmatpush1.msra.mxu0 0.0
    %193 = vmatprep.subr.mxu0 0.0
    %194 = vmatpush1.msra.mxu0 0.0
    %195 = vmatprep.subr.mxu0 0.0
    %196 = vmatpush1.msra.mxu0 0.0
    %197 = vmatprep.subr.mxu0 0.0
    %198 = vmatpush1.msra.mxu0 0.0
    %199 = vmatprep.subr.mxu0 0.0
    %200 = vmatpush1.msra.mxu0 0.0
    %201 = vmatprep.subr.mxu0 0.0
    %202 = vmatpush1.msra.mxu0 0.0
    %203 = vmatprep.subr.mxu0 0.0
    %204 = vmatpush1.msra.mxu0 0.0
    %205 = vmatprep.subr.mxu0 0.0
    %206 = vmatpush1.msra.mxu0 0.0
    %207 = vmatprep.subr.mxu0 0.0
    %208 = vmatpush1.msra.mxu0 0.0
    %209 = vmatprep.subr.mxu0 0.0
    %210 = vmatpush1.msra.mxu0 0.0
    %211 = vmatprep.subr.mxu0 0.0
    %212 = vmatpush1.msra.mxu0 0.0
    %213 = vmatprep.subr.mxu0 0.0
    %214 = vmatpush1.msra.mxu0 0.0
    %215 = vmatprep.subr.mxu0 0.0
    %216 = vmatpush1.msra.mxu0 0.0
    %217 = vmatprep.subr.mxu0 0.0
    %218 = vmatpush1.msra.mxu0 0.0
    %219 = vmatprep.subr.mxu0 0.0
    %220 = vmatpush1.msra.mxu0 0.0
    %221 = vmatprep.subr.mxu0 0.0
    %222 = vmatpush1.msra.mxu0 0.0
    %223 = vmatprep.subr.mxu0 0.0
    %224 = vmatpush1.msra.mxu0 0.0
    %225 = vmatprep.subr.mxu0 0.0
    %226 = vmatpush1.msra.mxu0 0.0
    %227 = vmatprep.subr.mxu0 0.0
    %228 = vmatpush1.msra.mxu0 0.0
    %229 = vmatprep.subr.mxu0 0.0
    %230 = vmatpush1.msra.mxu0 0.0
    %231 = vmatprep.subr.mxu0 0.0
    %232 = vmatpush1.msra.mxu0 0.0
    %233 = vmatprep.subr.mxu0 0.0
    %234 = vmatpush1.msra.mxu0 0.0
    %235 = vmatprep.subr.mxu0 0.0
    %236 = vmatpush1.msra.mxu0 0.0
    %237 = vmatprep.subr.mxu0 0.0
    %238 = vmatpush1.msra.mxu0 0.0
    %239 = vmatprep.subr.mxu0 0.0
    %240 = vmatpush1.msra.mxu0 0.0
    %241 = vmatprep.subr.mxu0 0.0
    %242 = vmatpush1.msra.mxu0 0.0
    %243 = vmatprep.subr.mxu0 0.0
    %244 = vmatpush1.msra.mxu0 0.0
    %245 = vmatprep.mubr.f32.mxu0 0.0
    %246 = vmatmul.mubr.f32.gmra.mrb[0].mxu0 %v179
    %v247 = vpop.f32.mrb[0].mxu0
    %v248 = vadd.f32 %v175, %v247
    %v249 = vpop.f32.mrb[0].mxu0
    %250 = vdwg.mxu0
    %v251 = vmax.f32 %v248, 0.0
    %v252 = vld [vmem:[#allocation8] sm:$0xff]
    %v253 = vld [vmem:[#allocation8 + $0x8] sm:$0xff]
    %v254 = vld [vmem:[#allocation8 + $0x10] sm:$0xff]
    %v255 = vld [vmem:[#allocation8 + $0x18] sm:$0xff]
    %v256 = vld [vmem:[%s6] sm:$0x1]
    %v258 = vlaneseq
    %v259 = vshrl.u32 %v258, 7
    %v260 = vsub.s32 0, %v259
    %v261 = vrot.slane %v256, %v260
    %v264 = vsel %vm177, %v251, 0
    %266 = vmatprep.subr.mxu0 0.0
    %267 = vmatpush1.msra.mxu0 %v252
    %268 = vmatprep.subr.mxu0 0.0
    %269 = vmatpush1.msra.mxu0 %v253
    %270 = vmatprep.subr.mxu0 0.0
    %271 = vmatpush1.msra.mxu0 %v254
    %272 = vmatprep.subr.mxu0 0.0
    %273 = vmatpush1.msra.mxu0 %v255
    %274 = vmatprep.subr.mxu0 0.0
    %275 = vmatpush1.msra.mxu0 0.0
    %276 = vmatprep.subr.mxu0 0.0
    %277 = vmatpush1.msra.mxu0 0.0
    %278 = vmatprep.subr.mxu0 0.0
    %279 = vmatpush1.msra.mxu0 0.0
    %280 = vmatprep.subr.mxu0 0.0
    %281 = vmatpush1.msra.mxu0 0.0
    %282 = vmatprep.subr.mxu0 0.0
    %283 = vmatpush1.msra.mxu0 0.0
    %284 = vmatprep.subr.mxu0 0.0
    %285 = vmatpush1.msra.mxu0 0.0
    %286 = vmatprep.subr.mxu0 0.0
    %287 = vmatpush1.msra.mxu0 0.0
    %288 = vmatprep.subr.mxu0 0.0
    %289 = vmatpush1.msra.mxu0 0.0
    %290 = vmatprep.subr.mxu0 0.0
    %291 = vmatpush1.msra.mxu0 0.0
    %292 = vmatprep.subr.mxu0 0.0
    %293 = vmatpush1.msra.mxu0 0.0
    %294 = vmatprep.subr.mxu0 0.0
    %295 = vmatpush1.msra.mxu0 0.0
    %296 = vmatprep.subr.mxu0 0.0
    %297 = vmatpush1.msra.mxu0 0.0
    %298 = vmatprep.subr.mxu0 0.0
    %299 = vmatpush1.msra.mxu0 0.0
    %300 = vmatprep.subr.mxu0 0.0
    %301 = vmatpush1.msra.mxu0 0.0
    %302 = vmatprep.subr.mxu0 0.0
    %303 = vmatpush1.msra.mxu0 0.0
    %304 = vmatprep.subr.mxu0 0.0
    %305 = vmatpush1.msra.mxu0 0.0
    %306 = vmatprep.subr.mxu0 0.0
    %307 = vmatpush1.msra.mxu0 0.0
    %308 = vmatprep.subr.mxu0 0.0
    %309 = vmatpush1.msra.mxu0 0.0
    %310 = vmatprep.subr.mxu0 0.0
    %311 = vmatpush1.msra.mxu0 0.0
    %312 = vmatprep.subr.mxu0 0.0
    %313 = vmatpush1.msra.mxu0 0.0
    %314 = vmatprep.subr.mxu0 0.0
    %315 = vmatpush1.msra.mxu0 0.0
    %316 = vmatprep.subr.mxu0 0.0
    %317 = vmatpush1.msra.mxu0 0.0
    %318 = vmatprep.subr.mxu0 0.0
    %319 = vmatpush1.msra.mxu0 0.0
    %320 = vmatprep.subr.mxu0 0.0
    %321 = vmatpush1.msra.mxu0 0.0
    %322 = vmatprep.subr.mxu0 0.0
    %323 = vmatpush1.msra.mxu0 0.0
    %324 = vmatprep.subr.mxu0 0.0
    %325 = vmatpush1.msra.mxu0 0.0
    %326 = vmatprep.subr.mxu0 0.0
    %327 = vmatpush1.msra.mxu0 0.0
    %328 = vmatprep.subr.mxu0 0.0
    %329 = vmatpush1.msra.mxu0 0.0
    %330 = vmatprep.mubr.f32.mxu0 0.0
    %331 = vmatmul.mubr.f32.gmra.mrb[0].mxu0 %v264
    %v332 = vpop.f32.mrb[0].mxu0
    %v333 = vadd.f32 %v261, %v332
    %v334 = vpop.f32.mrb[0].mxu0
    %335 = vdwg.mxu0
    %336 = vst [vmem:[#allocation10] sm:$0xff] %v333
    // Predicated region
    $region46: #{tpu_custom_call.1} parent=1 // pred_check
      _
    $region47: #{tpu_custom_call.1} parent=1 // pred_check_branch
      %338 = sbr.rel (0) target = $region49
    $region48: #{tpu_custom_call.1} parent=1 // pred_region
      %s340 = ssub.s32 128, 128
      %341 = vsyncadd [#allocation4], %s340
      %s343 = sshll.u32 [#allocation10], 4
      %s344 = int_to_ptr.vmem [resolvable:$true] %s343
      %346 = dma.vmem_to_hbm [thread:$0]  %s344, 128, %s7, [#allocation4]
    $region49: #{tpu_custom_call.1} parent=1 // pred_fallthru
      _
    // Predicated region
    $region50: #{tpu_custom_call.1} parent=1 // pred_check
      _
    $region51: #{tpu_custom_call.1} parent=1 // pred_check_branch
      %348 = sbr.rel (0) target = $region53
    $region52: #{tpu_custom_call.1} parent=1 // pred_region
      %349 = dma.done [#allocation4], 128
    $region53: #{tpu_custom_call.1} parent=1 // pred_fallthru
      _
    %350 = vsyncpa [#allocation3], 1
    %351 = vsyncpa [#allocation6], 1
    %352 = vsyncpa [#allocation9], 1
    %353 = vsyncpa [#allocation4], 1

</llo_original>
